<compile_context>
chip_gen: v6e
topology: v6e:2x2x1
jax: 0.10.0
libtpu: 0.0.40
codegen_flags: <defaults>
</compile_context>

<pallas_src>
import functools
import math

import jax
import jax.numpy as jnp
import numpy as np
from jax import lax
from jax.experimental import pallas as pl
from jax.experimental.pallas import tpu as pltpu

LANE = 128  # TPU lane width


def _zono_relu_kernel(center_ref, gens_ref,
                      newc_ref, newg_ref, allpos_ref, allneg_ref,
                      *, G, TM, N_orig, has_pad, optimize_slope):
    """One grid step processes a (TM, 128) tile of activations and all G generators."""
    c = center_ref[...]                                   # (TM, LANE)

    # ---- Pass 1: accumulate sum_g |g_k|, one (TM,128) slice at a time ------
    if G <= 16:
        abs_sum = jnp.abs(gens_ref[0])
        for k in range(1, G):
            abs_sum = abs_sum + jnp.abs(gens_ref[k])
    else:
        abs_sum = lax.fori_loop(
            1, G, lambda k, acc: acc + jnp.abs(gens_ref[k]), jnp.abs(gens_ref[0]))

    l = c - abs_sum
    u = c + abs_sum

    crossing = jnp.logical_and(l < 0.0, u > 0.0)

    # u - l == 2 * abs_sum; reuse the reduction and use the reciprocal unit.
    raw_slope = u * pl.reciprocal(abs_sum + abs_sum, approx=False)
    if optimize_slope:
        # slope_param is deterministically initialized to ones -> sigmoid(1) const.
        raw_slope = raw_slope * (1.0 / (1.0 + math.exp(-1.0)))

    # slope masked to 0 outside crossing (also scrubs NaN/Inf when abs_sum==0);
    # eff_slope is the identity scale outside crossing.
    slope = jnp.where(crossing, raw_slope, 0.0)
    eff_slope = jnp.where(crossing, raw_slope, 1.0)

    new_gen_row = slope * (l * -0.5)                      # 0 outside crossing

    # center' = where(crossing, c*slope + new_gen, c)  ==  c*eff_slope + new_gen
    newc_ref[...] = (c * eff_slope + new_gen_row).astype(newc_ref.dtype)

    # ---- Pass 2: scale old generators slice-by-slice, append the new one ---
    if G <= 16:
        for k in range(G):
            newg_ref[k] = (gens_ref[k] * eff_slope).astype(newg_ref.dtype)
    else:
        @pl.loop(0, G)
        def _(k):
            newg_ref[k] = (gens_ref[k] * eff_slope).astype(newg_ref.dtype)
    newg_ref[G] = new_gen_row.astype(newg_ref.dtype)

    # ---- Per-tile all(l > 0) / all(u < 0) flags (reduced in the wrapper) ----
    l_pos = l > 0.0
    u_neg = u < 0.0
    if not has_pad:
        allpos_ref[...] = jnp.all(l_pos, axis=0, keepdims=True).astype(jnp.int32)
        allneg_ref[...] = jnp.all(u_neg, axis=0, keepdims=True).astype(jnp.int32)
    else:
        i = pl.program_id(0)
        last = pl.num_programs(0) - 1

        @pl.when(i != last)
        def _():
            allpos_ref[...] = jnp.all(l_pos, axis=0, keepdims=True).astype(jnp.int32)
            allneg_ref[...] = jnp.all(u_neg, axis=0, keepdims=True).astype(jnp.int32)

        @pl.when(i == last)
        def _():
            base = i * (TM * LANE)
            flat_idx = (base
                        + lax.broadcasted_iota(jnp.int32, (TM, LANE), 0) * LANE
                        + lax.broadcasted_iota(jnp.int32, (TM, LANE), 1))
            invalid = flat_idx >= N_orig
            allpos_ref[...] = jnp.all(jnp.logical_or(l_pos, invalid),
                                      axis=0, keepdims=True).astype(jnp.int32)
            allneg_ref[...] = jnp.all(jnp.logical_or(u_neg, invalid),
                                      axis=0, keepdims=True).astype(jnp.int32)


def zono_relu(center, generators, optimize_slope=False, tm=None,
              vmem_budget_bytes=40 * 1024 * 1024):
    """Pallas ZonoReLU. Returns (new_center, new_generators)."""
    assert generators.shape[1:] == center.shape, "generators must be (G, *center.shape)"
    orig_shape = center.shape
    G = int(generators.shape[0])
    assert G >= 1
    N = int(np.prod(orig_shape))

    # ---- Tile-size selection: largest tile that fits the VMEM budget --------
    # Double-buffered blocks: center in/out (2+2) + gens in (2G) + gens out
    # (2(G+1)) plus ~6 (tm,128) temporaries -> (4G + 12) rows of 128 f32 per tm.
    M_raw = -(-N // LANE)
    if tm is None:
        bytes_per_row = (4 * G + 12) * LANE * 4
        tm = vmem_budget_bytes // bytes_per_row
        tm = max(8, min(1024, (tm // 8) * 8))
    tm = min(int(tm), -(-M_raw // 8) * 8)        # clamp to the problem size
    tm = max(8, (tm // 8) * 8)                   # keep a multiple of 8 sublanes

    M = -(-M_raw // tm) * tm
    N_pad = M * LANE
    grid_tiles = M // tm
    has_pad = (N_pad != N)

    # ---- Glue: lane-dense (M, 128) view; pad only when actually needed ------
    c_flat = center.reshape(-1)
    g_flat = generators.reshape(G, -1)
    if has_pad:
        c_flat = jnp.pad(c_flat, (0, N_pad - N))
        g_flat = jnp.pad(g_flat, ((0, 0), (0, N_pad - N)))
    c2 = c_flat.reshape(M, LANE)
    g2 = g_flat.reshape(G, M, LANE)

    kernel = functools.partial(_zono_relu_kernel, G=G, TM=tm, N_orig=N,
                               has_pad=has_pad, optimize_slope=optimize_slope)

    est_bytes = (4 * G + 12) * tm * LANE * 4
    # Raise the scoped-VMEM limit (v5e default is only 16 MiB), but keep it
    # well under v7x's 64 MiB physical VMEM.
    vmem_limit = int(min(max(32 * 1024 * 1024, est_bytes + 8 * 1024 * 1024),
                         60 * 1024 * 1024))

    new_c, new_g, allpos_t, allneg_t = pl.pallas_call(
        kernel,
        out_shape=(
            jax.ShapeDtypeStruct((M, LANE), center.dtype),
            jax.ShapeDtypeStruct((G + 1, M, LANE), generators.dtype),
            jax.ShapeDtypeStruct((grid_tiles, LANE), jnp.int32),
            jax.ShapeDtypeStruct((grid_tiles, LANE), jnp.int32),
        ),
        grid_spec=pltpu.PrefetchScalarGridSpec(
            num_scalar_prefetch=0,
            grid=(grid_tiles,),
            in_specs=[
                pl.BlockSpec((tm, LANE), lambda i: (i, 0)),
                pl.BlockSpec((G, tm, LANE), lambda i: (0, i, 0)),
            ],
            out_specs=(
                pl.BlockSpec((tm, LANE), lambda i: (i, 0)),
                pl.BlockSpec((G + 1, tm, LANE), lambda i: (0, i, 0)),
                pl.BlockSpec((1, LANE), lambda i: (i, 0)),
                pl.BlockSpec((1, LANE), lambda i: (i, 0)),
            ),
        ),
        compiler_params=pltpu.CompilerParams(
            dimension_semantics=("parallel",),
            vmem_limit_bytes=vmem_limit),
    )(c2, g2)

    # Data-dependent, shape-changing branch (mirrors torch.all(), which forces
    # a device->host sync in the original module; intentionally un-jittable).
    allpos = bool(jnp.all(allpos_t != 0))
    allneg = bool(jnp.all(allneg_t != 0))

    if allpos:
        return center, generators
    elif allneg:
        return jnp.zeros_like(center), jnp.zeros_like(generators)
    else:
        if has_pad:
            new_center = new_c.reshape(-1)[:N].reshape(orig_shape)
            new_gens = new_g.reshape(G + 1, -1)[:, :N].reshape((G + 1,) + orig_shape)
        else:
            new_center = new_c.reshape(orig_shape)
            new_gens = new_g.reshape((G + 1,) + orig_shape)
        return new_center, new_gens


# TODO(synk): optimize_slope=True in the original registers a learnable
# nn.Parameter at forward time; here it is the constant sigmoid(1) (its
# deterministic ones-init), since Pallas kernels have no trainable state.


def _zono_relu_crossing_ref(center, gens):
    """Pure-JAX reference for the crossing branch (for verification)."""
    abs_sum = jnp.sum(jnp.abs(gens), axis=0)
    l = center - abs_sum
    u = center + abs_sum
    crossing = jnp.logical_and(l < 0, u > 0)
    slope = (u / (u - l)) * crossing.astype(center.dtype)
    new_gen = -slope * l * 0.5
    new_center = jnp.where(crossing, center * slope + new_gen, center)
    new_gens = jnp.concatenate(
        [jnp.where(crossing, gens * slope, gens), new_gen[None]], axis=0)
    return new_center, new_gens


if __name__ == "__main__":
    key = jax.random.PRNGKey(0)
    kc, kg = jax.random.split(key)
    B, C, H, W, G = 2, 4, 16, 16, 8
    center = jax.random.normal(kc, (B, C, H, W), dtype=jnp.float32)
    generators = 0.1 * jax.random.normal(kg, (G, B, C, H, W), dtype=jnp.float32)

    new_center, new_gens = zono_relu(center, generators, optimize_slope=False)
    jax.block_until_ready((new_center, new_gens))

    # Random normal centers straddle zero -> crossing branch; check against reference.
    ref_c, ref_g = _zono_relu_crossing_ref(center, generators)
    assert new_gens.shape == (G + 1, B, C, H, W)
    np.testing.assert_allclose(np.asarray(new_center), np.asarray(ref_c),
                               rtol=1e-5, atol=1e-5)
    np.testing.assert_allclose(np.asarray(new_gens), np.asarray(ref_g),
                               rtol=1e-5, atol=1e-5)

    # Exercise the all-negative early-exit branch as well.
    zc, zg = zono_relu(center - 100.0, generators)
    jax.block_until_ready((zc, zg))
    assert float(jnp.max(jnp.abs(zc))) == 0.0 and float(jnp.max(jnp.abs(zg))) == 0.0

    # And the all-positive identity branch.
    pc, pg = zono_relu(center + 100.0, generators)
    jax.block_until_ready((pc, pg))
    np.testing.assert_allclose(np.asarray(pc), np.asarray(center + 100.0))

    print("KERNEL_OK")
</pallas_src>

<mosaic_0001>
module attributes {stable_mosaic.version = 11 : i64} {
  func.func @_zono_relu_kernel(%arg0: i32, %arg1: memref<16x128xf32, #tpu.memory_space<vmem>>, %arg2: memref<8x16x128xf32, #tpu.memory_space<vmem>>, %arg3: memref<16x128xf32, #tpu.memory_space<vmem>>, %arg4: memref<9x16x128xf32, #tpu.memory_space<vmem>>, %arg5: memref<1x128xi32, #tpu.memory_space<vmem>>, %arg6: memref<1x128xi32, #tpu.memory_space<vmem>>) attributes {dimension_semantics = [#tpu.dimension_semantics<parallel>], iteration_bounds = array<i64: 1>, scalar_prefetch = 0 : i64, scratch_operands = 0 : i64, tpu.core_type = #tpu.core_type<tc>, window_params = [{transform_indices = @transform_0, window_bounds = array<i64: 16, 128>}, {transform_indices = @transform_1, window_bounds = array<i64: 8, 16, 128>}, {transform_indices = @transform_2, window_bounds = array<i64: 16, 128>}, {transform_indices = @transform_3, window_bounds = array<i64: 9, 16, 128>}, {transform_indices = @transform_4, window_bounds = array<i64: 1, 128>}, {transform_indices = @transform_5, window_bounds = array<i64: 1, 128>}]} {
    %c0 = arith.constant 0 : index
    %c0_0 = arith.constant 0 : index
    %0 = vector.load %arg1[%c0, %c0_0] : memref<16x128xf32, #tpu.memory_space<vmem>>, vector<16x128xf32>
    %c0_1 = arith.constant 0 : index
    %c0_2 = arith.constant 0 : index
    %c0_3 = arith.constant 0 : index
    %1 = vector.load %arg2[%c0_1, %c0_2, %c0_3] : memref<8x16x128xf32, #tpu.memory_space<vmem>>, vector<1x16x128xf32>
    %2 = vector.shape_cast %1 : vector<1x16x128xf32> to vector<16x128xf32>
    %3 = math.absf %2 : vector<16x128xf32>
    %c1 = arith.constant 1 : index
    %c0_4 = arith.constant 0 : index
    %c0_5 = arith.constant 0 : index
    %4 = vector.load %arg2[%c1, %c0_4, %c0_5] : memref<8x16x128xf32, #tpu.memory_space<vmem>>, vector<1x16x128xf32>
    %5 = vector.shape_cast %4 : vector<1x16x128xf32> to vector<16x128xf32>
    %6 = math.absf %5 : vector<16x128xf32>
    %7 = arith.addf %3, %6 : vector<16x128xf32>
    %c2 = arith.constant 2 : index
    %c0_6 = arith.constant 0 : index
    %c0_7 = arith.constant 0 : index
    %8 = vector.load %arg2[%c2, %c0_6, %c0_7] : memref<8x16x128xf32, #tpu.memory_space<vmem>>, vector<1x16x128xf32>
    %9 = vector.shape_cast %8 : vector<1x16x128xf32> to vector<16x128xf32>
    %10 = math.absf %9 : vector<16x128xf32>
    %11 = arith.addf %7, %10 : vector<16x128xf32>
    %c3 = arith.constant 3 : index
    %c0_8 = arith.constant 0 : index
    %c0_9 = arith.constant 0 : index
    %12 = vector.load %arg2[%c3, %c0_8, %c0_9] : memref<8x16x128xf32, #tpu.memory_space<vmem>>, vector<1x16x128xf32>
    %13 = vector.shape_cast %12 : vector<1x16x128xf32> to vector<16x128xf32>
    %14 = math.absf %13 : vector<16x128xf32>
    %15 = arith.addf %11, %14 : vector<16x128xf32>
    %c4 = arith.constant 4 : index
    %c0_10 = arith.constant 0 : index
    %c0_11 = arith.constant 0 : index
    %16 = vector.load %arg2[%c4, %c0_10, %c0_11] : memref<8x16x128xf32, #tpu.memory_space<vmem>>, vector<1x16x128xf32>
    %17 = vector.shape_cast %16 : vector<1x16x128xf32> to vector<16x128xf32>
    %18 = math.absf %17 : vector<16x128xf32>
    %19 = arith.addf %15, %18 : vector<16x128xf32>
    %c5 = arith.constant 5 : index
    %c0_12 = arith.constant 0 : index
    %c0_13 = arith.constant 0 : index
    %20 = vector.load %arg2[%c5, %c0_12, %c0_13] : memref<8x16x128xf32, #tpu.memory_space<vmem>>, vector<1x16x128xf32>
    %21 = vector.shape_cast %20 : vector<1x16x128xf32> to vector<16x128xf32>
    %22 = math.absf %21 : vector<16x128xf32>
    %23 = arith.addf %19, %22 : vector<16x128xf32>
    %c6 = arith.constant 6 : index
    %c0_14 = arith.constant 0 : index
    %c0_15 = arith.constant 0 : index
    %24 = vector.load %arg2[%c6, %c0_14, %c0_15] : memref<8x16x128xf32, #tpu.memory_space<vmem>>, vector<1x16x128xf32>
    %25 = vector.shape_cast %24 : vector<1x16x128xf32> to vector<16x128xf32>
    %26 = math.absf %25 : vector<16x128xf32>
    %27 = arith.addf %23, %26 : vector<16x128xf32>
    %c7 = arith.constant 7 : index
    %c0_16 = arith.constant 0 : index
    %c0_17 = arith.constant 0 : index
    %28 = vector.load %arg2[%c7, %c0_16, %c0_17] : memref<8x16x128xf32, #tpu.memory_space<vmem>>, vector<1x16x128xf32>
    %29 = vector.shape_cast %28 : vector<1x16x128xf32> to vector<16x128xf32>
    %30 = math.absf %29 : vector<16x128xf32>
    %31 = arith.addf %27, %30 : vector<16x128xf32>
    %32 = arith.subf %0, %31 : vector<16x128xf32>
    %33 = arith.addf %0, %31 : vector<16x128xf32>
    %cst = arith.constant 0.000000e+00 : f32
    %34 = vector.broadcast %cst : f32 to vector<16x128xf32>
    %35 = arith.cmpf olt, %32, %34 : vector<16x128xf32>
    %cst_18 = arith.constant 0.000000e+00 : f32
    %36 = vector.broadcast %cst_18 : f32 to vector<16x128xf32>
    %37 = arith.cmpf ogt, %33, %36 : vector<16x128xf32>
    %38 = arith.andi %35, %37 : vector<16x128xi1>
    %39 = arith.addf %31, %31 : vector<16x128xf32>
    %40 = tpu.reciprocal %39 : vector<16x128xf32> -> vector<16x128xf32>
    %41 = arith.mulf %33, %40 : vector<16x128xf32>
    %cst_19 = arith.constant 0.000000e+00 : f32
    %42 = vector.broadcast %cst_19 : f32 to vector<16x128xf32>
    %43 = arith.select %38, %41, %42 : vector<16x128xi1>, vector<16x128xf32>
    %cst_20 = arith.constant 1.000000e+00 : f32
    %44 = vector.broadcast %cst_20 : f32 to vector<16x128xf32>
    %45 = arith.select %38, %41, %44 : vector<16x128xi1>, vector<16x128xf32>
    %cst_21 = arith.constant -5.000000e-01 : f32
    %46 = vector.broadcast %cst_21 : f32 to vector<16x128xf32>
    %47 = arith.mulf %32, %46 : vector<16x128xf32>
    %48 = arith.mulf %43, %47 : vector<16x128xf32>
    %49 = arith.mulf %0, %45 : vector<16x128xf32>
    %50 = arith.addf %49, %48 : vector<16x128xf32>
    %c0_22 = arith.constant 0 : index
    %c0_23 = arith.constant 0 : index
    %51 = vector.load %arg3[%c0_22, %c0_23] : memref<16x128xf32, #tpu.memory_space<vmem>>, vector<16x128xf32>
    tpu.vector_store %arg3[%c0_22, %c0_23], %50 {strides = array<i32>} : memref<16x128xf32, #tpu.memory_space<vmem>>, vector<16x128xf32>,
    %c0_24 = arith.constant 0 : index
    %c0_25 = arith.constant 0 : index
    %c0_26 = arith.constant 0 : index
    %52 = vector.load %arg2[%c0_24, %c0_25, %c0_26] : memref<8x16x128xf32, #tpu.memory_space<vmem>>, vector<1x16x128xf32>
    %53 = vector.shape_cast %52 : vector<1x16x128xf32> to vector<16x128xf32>
    %54 = arith.mulf %53, %45 : vector<16x128xf32>
    %c0_27 = arith.constant 0 : index
    %c0_28 = arith.constant 0 : index
    %c0_29 = arith.constant 0 : index
    %55 = vector.load %arg4[%c0_27, %c0_28, %c0_29] : memref<9x16x128xf32, #tpu.memory_space<vmem>>, vector<1x16x128xf32>
    %56 = vector.shape_cast %55 : vector<1x16x128xf32> to vector<16x128xf32>
    %57 = vector.shape_cast %54 : vector<16x128xf32> to vector<1x16x128xf32>
    tpu.vector_store %arg4[%c0_27, %c0_28, %c0_29], %57 {strides = array<i32>} : memref<9x16x128xf32, #tpu.memory_space<vmem>>, vector<1x16x128xf32>,
    %c1_30 = arith.constant 1 : index
    %c0_31 = arith.constant 0 : index
    %c0_32 = arith.constant 0 : index
    %58 = vector.load %arg2[%c1_30, %c0_31, %c0_32] : memref<8x16x128xf32, #tpu.memory_space<vmem>>, vector<1x16x128xf32>
    %59 = vector.shape_cast %58 : vector<1x16x128xf32> to vector<16x128xf32>
    %60 = arith.mulf %59, %45 : vector<16x128xf32>
    %c1_33 = arith.constant 1 : index
    %c0_34 = arith.constant 0 : index
    %c0_35 = arith.constant 0 : index
    %61 = vector.load %arg4[%c1_33, %c0_34, %c0_35] : memref<9x16x128xf32, #tpu.memory_space<vmem>>, vector<1x16x128xf32>
    %62 = vector.shape_cast %61 : vector<1x16x128xf32> to vector<16x128xf32>
    %63 = vector.shape_cast %60 : vector<16x128xf32> to vector<1x16x128xf32>
    tpu.vector_store %arg4[%c1_33, %c0_34, %c0_35], %63 {strides = array<i32>} : memref<9x16x128xf32, #tpu.memory_space<vmem>>, vector<1x16x128xf32>,
    %c2_36 = arith.constant 2 : index
    %c0_37 = arith.constant 0 : index
    %c0_38 = arith.constant 0 : index
    %64 = vector.load %arg2[%c2_36, %c0_37, %c0_38] : memref<8x16x128xf32, #tpu.memory_space<vmem>>, vector<1x16x128xf32>
    %65 = vector.shape_cast %64 : vector<1x16x128xf32> to vector<16x128xf32>
    %66 = arith.mulf %65, %45 : vector<16x128xf32>
    %c2_39 = arith.constant 2 : index
    %c0_40 = arith.constant 0 : index
    %c0_41 = arith.constant 0 : index
    %67 = vector.load %arg4[%c2_39, %c0_40, %c0_41] : memref<9x16x128xf32, #tpu.memory_space<vmem>>, vector<1x16x128xf32>
    %68 = vector.shape_cast %67 : vector<1x16x128xf32> to vector<16x128xf32>
    %69 = vector.shape_cast %66 : vector<16x128xf32> to vector<1x16x128xf32>
    tpu.vector_store %arg4[%c2_39, %c0_40, %c0_41], %69 {strides = array<i32>} : memref<9x16x128xf32, #tpu.memory_space<vmem>>, vector<1x16x128xf32>,
    %c3_42 = arith.constant 3 : index
    %c0_43 = arith.constant 0 : index
    %c0_44 = arith.constant 0 : index
    %70 = vector.load %arg2[%c3_42, %c0_43, %c0_44] : memref<8x16x128xf32, #tpu.memory_space<vmem>>, vector<1x16x128xf32>
    %71 = vector.shape_cast %70 : vector<1x16x128xf32> to vector<16x128xf32>
    %72 = arith.mulf %71, %45 : vector<16x128xf32>
    %c3_45 = arith.constant 3 : index
    %c0_46 = arith.constant 0 : index
    %c0_47 = arith.constant 0 : index
    %73 = vector.load %arg4[%c3_45, %c0_46, %c0_47] : memref<9x16x128xf32, #tpu.memory_space<vmem>>, vector<1x16x128xf32>
    %74 = vector.shape_cast %73 : vector<1x16x128xf32> to vector<16x128xf32>
    %75 = vector.shape_cast %72 : vector<16x128xf32> to vector<1x16x128xf32>
    tpu.vector_store %arg4[%c3_45, %c0_46, %c0_47], %75 {strides = array<i32>} : memref<9x16x128xf32, #tpu.memory_space<vmem>>, vector<1x16x128xf32>,
    %c4_48 = arith.constant 4 : index
    %c0_49 = arith.constant 0 : index
    %c0_50 = arith.constant 0 : index
    %76 = vector.load %arg2[%c4_48, %c0_49, %c0_50] : memref<8x16x128xf32, #tpu.memory_space<vmem>>, vector<1x16x128xf32>
    %77 = vector.shape_cast %76 : vector<1x16x128xf32> to vector<16x128xf32>
    %78 = arith.mulf %77, %45 : vector<16x128xf32>
    %c4_51 = arith.constant 4 : index
    %c0_52 = arith.constant 0 : index
    %c0_53 = arith.constant 0 : index
    %79 = vector.load %arg4[%c4_51, %c0_52, %c0_53] : memref<9x16x128xf32, #tpu.memory_space<vmem>>, vector<1x16x128xf32>
    %80 = vector.shape_cast %79 : vector<1x16x128xf32> to vector<16x128xf32>
    %81 = vector.shape_cast %78 : vector<16x128xf32> to vector<1x16x128xf32>
    tpu.vector_store %arg4[%c4_51, %c0_52, %c0_53], %81 {strides = array<i32>} : memref<9x16x128xf32, #tpu.memory_space<vmem>>, vector<1x16x128xf32>,
    %c5_54 = arith.constant 5 : index
    %c0_55 = arith.constant 0 : index
    %c0_56 = arith.constant 0 : index
    %82 = vector.load %arg2[%c5_54, %c0_55, %c0_56] : memref<8x16x128xf32, #tpu.memory_space<vmem>>, vector<1x16x128xf32>
    %83 = vector.shape_cast %82 : vector<1x16x128xf32> to vector<16x128xf32>
    %84 = arith.mulf %83, %45 : vector<16x128xf32>
    %c5_57 = arith.constant 5 : index
    %c0_58 = arith.constant 0 : index
    %c0_59 = arith.constant 0 : index
    %85 = vector.load %arg4[%c5_57, %c0_58, %c0_59] : memref<9x16x128xf32, #tpu.memory_space<vmem>>, vector<1x16x128xf32>
    %86 = vector.shape_cast %85 : vector<1x16x128xf32> to vector<16x128xf32>
    %87 = vector.shape_cast %84 : vector<16x128xf32> to vector<1x16x128xf32>
    tpu.vector_store %arg4[%c5_57, %c0_58, %c0_59], %87 {strides = array<i32>} : memref<9x16x128xf32, #tpu.memory_space<vmem>>, vector<1x16x128xf32>,
    %c6_60 = arith.constant 6 : index
    %c0_61 = arith.constant 0 : index
    %c0_62 = arith.constant 0 : index
    %88 = vector.load %arg2[%c6_60, %c0_61, %c0_62] : memref<8x16x128xf32, #tpu.memory_space<vmem>>, vector<1x16x128xf32>
    %89 = vector.shape_cast %88 : vector<1x16x128xf32> to vector<16x128xf32>
    %90 = arith.mulf %89, %45 : vector<16x128xf32>
    %c6_63 = arith.constant 6 : index
    %c0_64 = arith.constant 0 : index
    %c0_65 = arith.constant 0 : index
    %91 = vector.load %arg4[%c6_63, %c0_64, %c0_65] : memref<9x16x128xf32, #tpu.memory_space<vmem>>, vector<1x16x128xf32>
    %92 = vector.shape_cast %91 : vector<1x16x128xf32> to vector<16x128xf32>
    %93 = vector.shape_cast %90 : vector<16x128xf32> to vector<1x16x128xf32>
    tpu.vector_store %arg4[%c6_63, %c0_64, %c0_65], %93 {strides = array<i32>} : memref<9x16x128xf32, #tpu.memory_space<vmem>>, vector<1x16x128xf32>,
    %c7_66 = arith.constant 7 : index
    %c0_67 = arith.constant 0 : index
    %c0_68 = arith.constant 0 : index
    %94 = vector.load %arg2[%c7_66, %c0_67, %c0_68] : memref<8x16x128xf32, #tpu.memory_space<vmem>>, vector<1x16x128xf32>
    %95 = vector.shape_cast %94 : vector<1x16x128xf32> to vector<16x128xf32>
    %96 = arith.mulf %95, %45 : vector<16x128xf32>
    %c7_69 = arith.constant 7 : index
    %c0_70 = arith.constant 0 : index
    %c0_71 = arith.constant 0 : index
    %97 = vector.load %arg4[%c7_69, %c0_70, %c0_71] : memref<9x16x128xf32, #tpu.memory_space<vmem>>, vector<1x16x128xf32>
    %98 = vector.shape_cast %97 : vector<1x16x128xf32> to vector<16x128xf32>
    %99 = vector.shape_cast %96 : vector<16x128xf32> to vector<1x16x128xf32>
    tpu.vector_store %arg4[%c7_69, %c0_70, %c0_71], %99 {strides = array<i32>} : memref<9x16x128xf32, #tpu.memory_space<vmem>>, vector<1x16x128xf32>,
    %c8 = arith.constant 8 : index
    %c0_72 = arith.constant 0 : index
    %c0_73 = arith.constant 0 : index
    %100 = vector.load %arg4[%c8, %c0_72, %c0_73] : memref<9x16x128xf32, #tpu.memory_space<vmem>>, vector<1x16x128xf32>
    %101 = vector.shape_cast %100 : vector<1x16x128xf32> to vector<16x128xf32>
    %102 = vector.shape_cast %48 : vector<16x128xf32> to vector<1x16x128xf32>
    tpu.vector_store %arg4[%c8, %c0_72, %c0_73], %102 {strides = array<i32>} : memref<9x16x128xf32, #tpu.memory_space<vmem>>, vector<1x16x128xf32>,
    %cst_74 = arith.constant 0.000000e+00 : f32
    %103 = vector.broadcast %cst_74 : f32 to vector<16x128xf32>
    %104 = arith.cmpf ogt, %32, %103 : vector<16x128xf32>
    %cst_75 = arith.constant 0.000000e+00 : f32
    %105 = vector.broadcast %cst_75 : f32 to vector<16x128xf32>
    %106 = arith.cmpf olt, %33, %105 : vector<16x128xf32>
    %cst_76 = arith.constant 1.000000e+00 : f32
    %cst_77 = arith.constant 0.000000e+00 : f32
    %107 = vector.broadcast %cst_76 : f32 to vector<16x128xf32>
    %108 = vector.broadcast %cst_77 : f32 to vector<16x128xf32>
    %109 = arith.select %104, %107, %108 : vector<16x128xi1>, vector<16x128xf32>
    %cst_78 = arith.constant dense<0x7F800000> : vector<128xf32>
    %110 = vector.multi_reduction <minimumf>, %109, %cst_78 [0] : vector<16x128xf32> to vector<128xf32>
    %cst_79 = arith.constant 0.000000e+00 : f32
    %111 = vector.broadcast %cst_79 : f32 to vector<128xf32>
    %112 = arith.cmpf ogt, %110, %111 : vector<128xf32>
    %113 = vector.shape_cast %112 : vector<128xi1> to vector<1x128xi1>
    %114 = arith.extui %113 : vector<1x128xi1> to vector<1x128xi32>
    %c0_80 = arith.constant 0 : index
    %c0_81 = arith.constant 0 : index
    %115 = vector.load %arg5[%c0_80, %c0_81] : memref<1x128xi32, #tpu.memory_space<vmem>>, vector<1x128xi32>
    tpu.vector_store %arg5[%c0_80, %c0_81], %114 {strides = array<i32>} : memref<1x128xi32, #tpu.memory_space<vmem>>, vector<1x128xi32>,
    %cst_82 = arith.constant 1.000000e+00 : f32
    %cst_83 = arith.constant 0.000000e+00 : f32
    %116 = vector.broadcast %cst_82 : f32 to vector<16x128xf32>
    %117 = vector.broadcast %cst_83 : f32 to vector<16x128xf32>
    %118 = arith.select %106, %116, %117 : vector<16x128xi1>, vector<16x128xf32>
    %cst_84 = arith.constant dense<0x7F800000> : vector<128xf32>
    %119 = vector.multi_reduction <minimumf>, %118, %cst_84 [0] : vector<16x128xf32> to vector<128xf32>
    %cst_85 = arith.constant 0.000000e+00 : f32
    %120 = vector.broadcast %cst_85 : f32 to vector<128xf32>
    %121 = arith.cmpf ogt, %119, %120 : vector<128xf32>
    %122 = vector.shape_cast %121 : vector<128xi1> to vector<1x128xi1>
    %123 = arith.extui %122 : vector<1x128xi1> to vector<1x128xi32>
    %c0_86 = arith.constant 0 : index
    %c0_87 = arith.constant 0 : index
    %124 = vector.load %arg6[%c0_86, %c0_87] : memref<1x128xi32, #tpu.memory_space<vmem>>, vector<1x128xi32>
    tpu.vector_store %arg6[%c0_86, %c0_87], %123 {strides = array<i32>} : memref<1x128xi32, #tpu.memory_space<vmem>>, vector<1x128xi32>,
    return
  }
  func.func @transform_0(%arg0: i32) -> (i32, i32) {
    %c0_i32 = arith.constant 0 : i32
    %c0_i32_0 = arith.constant 0 : i32
    return %arg0, %c0_i32 : i32, i32
  }
  func.func @transform_1(%arg0: i32) -> (i32, i32, i32) {
    %c0_i32 = arith.constant 0 : i32
    %c0_i32_0 = arith.constant 0 : i32
    %c0_i32_1 = arith.constant 0 : i32
    return %c0_i32, %arg0, %c0_i32_0 : i32, i32, i32
  }
  func.func @transform_2(%arg0: i32) -> (i32, i32) {
    %c0_i32 = arith.constant 0 : i32
    %c0_i32_0 = arith.constant 0 : i32
    return %arg0, %c0_i32 : i32, i32
  }
  func.func @transform_3(%arg0: i32) -> (i32, i32, i32) {
    %c0_i32 = arith.constant 0 : i32
    %c0_i32_0 = arith.constant 0 : i32
    %c0_i32_1 = arith.constant 0 : i32
    return %c0_i32, %arg0, %c0_i32_0 : i32, i32, i32
  }
  func.func @transform_4(%arg0: i32) -> (i32, i32) {
    %c0_i32 = arith.constant 0 : i32
    %c0_i32_0 = arith.constant 0 : i32
    return %arg0, %c0_i32 : i32, i32
  }
  func.func @transform_5(%arg0: i32) -> (i32, i32) {
    %c0_i32 = arith.constant 0 : i32
    %c0_i32_0 = arith.constant 0 : i32
    return %arg0, %c0_i32 : i32, i32
  }
}

</mosaic_0001>

<llo_original>
// kernel: tpu_custom_call.1
$region0: #{tpu_custom_call.1}
  #allocation0 [shape = 'u32[]', space=smem, size = 0x4, offset = 0x4, fixed_abs, tag = 'smem constant byte address 0x4 - core index']
  #allocation1 [shape = 'u32[144,128]{1,0:T(1,128)}', space=vmem, size = 0x12000, scoped, tag = 'internal scratch']
  %s0 = inlined_call_operand.hbm [shape: f32[16,128], index: 0, kind: input, shape index: {}]
  %s1 = inlined_call_operand.hbm [shape: f32[8,16,128], index: 1, kind: input, shape index: {}]
  %s2 = inlined_call_operand.hbm [shape: f32[16,128], index: 2, kind: output, shape index: {0}]
  %s3 = inlined_call_operand.hbm [shape: f32[9,16,128], index: 3, kind: output, shape index: {1}]
  %s4 = inlined_call_operand.hbm [shape: s32[1,128], index: 4, kind: output, shape index: {2}]
  %s5 = inlined_call_operand.hbm [shape: s32[1,128], index: 5, kind: output, shape index: {3}]
  %6 = xla_tuple %s2, %s3, %s4, %s5
  %s7 = sld [smem:[#allocation0]]
  $region50: #{tpu_custom_call.1} parent=0
    _
  %s9 = ssub.s32 1, %s7
  %s10 = scalar_select 0, %s9, %s7
  $region1: #{tpu_custom_call.1} parent=0
    #allocation2 [shape = 'u8[8192]{0}', space=vmem, size = 0x2000, scoped, tag = 'input window, operand 0, single buffered']
    #allocation3 [shape = 's32[1]{0}', space=sflag, size = 0x4, scoped, tag = 'scoped memory for tpu_custom_call.1']
    #allocation4 [shape = 's32[1]{0}', space=sflag, size = 0x4, scoped, tag = 'scoped memory for tpu_custom_call.1']
    #allocation5 [shape = 'u8[65536]{0}', space=vmem, size = 0x10000, scoped, tag = 'input window, operand 1, single buffered']
    #allocation6 [shape = 's32[1]{0}', space=sflag, size = 0x4, scoped, tag = 'scoped memory for tpu_custom_call.1']
    #allocation7 [shape = 'u8[8192]{0}', space=vmem, size = 0x2000, scoped, tag = 'output window, operand 0, single buffered']
    #allocation8 [shape = 'u8[73728]{0}', space=vmem, size = 0x12000, scoped, tag = 'output window, operand 1, single buffered']
    #allocation9 [shape = 's32[1]{0}', space=sflag, size = 0x4, scoped, tag = 'scoped memory for tpu_custom_call.1']
    #allocation10 [shape = 'u8[512]{0}', space=vmem, size = 0x400, scoped, tag = 'output window, operand 2, single buffered']
    #allocation11 [shape = 'u8[512]{0}', space=vmem, size = 0x400, scoped, tag = 'output window, operand 3, single buffered']
    #allocation12 [shape = 's32[1]{0}', space=sflag, size = 0x4, scoped, tag = 'scoped memory for tpu_custom_call.1']
    %11 = vsyncpa [#allocation3], 0
    %12 = vsyncpa [#allocation6], 0
    %13 = vsyncpa [#allocation4], 0
    %14 = vsyncpa [#allocation9], 0
    %15 = vsyncpa [#allocation12], 0
    // Predicated region
    $region2: #{tpu_custom_call.1} parent=1 // pred_check
      _
    $region3: #{tpu_custom_call.1} parent=1 // pred_check_branch
      %17 = sbr.rel (0) target = $region5
    $region4: #{tpu_custom_call.1} parent=1 // pred_region
      %s19 = ssub.s32 256, 256
      %20 = vsyncadd [#allocation3], %s19
      %s21 = sshll.u32 [#allocation2], 4
      %s22 = int_to_ptr.vmem [resolvable:$true] %s21
      %27 = dma.hbm_to_vmem [thread:$0]  %s0, 256, %s22, [#allocation3], 128, 128, 8
    $region5: #{tpu_custom_call.1} parent=1 // pred_fallthru
      _
    // Predicated region
    $region6: #{tpu_custom_call.1} parent=1 // pred_check
      _
    $region7: #{tpu_custom_call.1} parent=1 // pred_check_branch
      %29 = sbr.rel (0) target = $region9
    $region8: #{tpu_custom_call.1} parent=1 // pred_region
      %s31 = ssub.s32 2048, 2048
      %32 = vsyncadd [#allocation6], %s31
      %s33 = sshll.u32 [#allocation5], 4
      %s34 = int_to_ptr.vmem [resolvable:$true] %s33
      %39 = dma.hbm_to_vmem [thread:$0]  %s1, 2048, %s34, [#allocation6], 128, 128, 8
    $region9: #{tpu_custom_call.1} parent=1 // pred_fallthru
      _
    // Predicated region
    $region10: #{tpu_custom_call.1} parent=1 // pred_check
      _
    $region11: #{tpu_custom_call.1} parent=1 // pred_check_branch
      %41 = sbr.rel (0) target = $region13
    $region12: #{tpu_custom_call.1} parent=1 // pred_region
      %42 = dma.done [#allocation3], 256
    $region13: #{tpu_custom_call.1} parent=1 // pred_fallthru
      _
    // Predicated region
    $region14: #{tpu_custom_call.1} parent=1 // pred_check
      _
    $region15: #{tpu_custom_call.1} parent=1 // pred_check_branch
      %44 = sbr.rel (0) target = $region17
    $region16: #{tpu_custom_call.1} parent=1 // pred_region
      %45 = dma.done [#allocation6], 2048
    $region17: #{tpu_custom_call.1} parent=1 // pred_fallthru
      _
    %v46 = vld [vmem:[#allocation2] sm:$0xff]
    %v47 = vld [vmem:[#allocation2 + $0x8] sm:$0xff]
    %v48 = vld [vmem:[#allocation5] sm:$0xff]
    %v49 = vld [vmem:[#allocation5 + $0x8] sm:$0xff]
    %v50 = vand.u32 2147483647, %v48
    %v51 = vand.u32 2147483647, %v49
    %s52 = scalar_lea.vmem [#allocation5], 16
    %v53 = vld [vmem:[%s52] sm:$0xff]
    %v54 = vld [vmem:[%s52 + $0x8] sm:$0xff]
    %v55 = vand.u32 2147483647, %v53
    %v56 = vand.u32 2147483647, %v54
    %v57 = vadd.f32 %v50, %v55
    %v58 = vadd.f32 %v51, %v56
    %s59 = scalar_lea.vmem [#allocation5], 32
    %v60 = vld [vmem:[%s59] sm:$0xff]
    %v61 = vld [vmem:[%s59 + $0x8] sm:$0xff]
    %v62 = vand.u32 2147483647, %v60
    %v63 = vand.u32 2147483647, %v61
    %v64 = vadd.f32 %v57, %v62
    %v65 = vadd.f32 %v58, %v63
    %s66 = scalar_lea.vmem [#allocation5], 48
    %v67 = vld [vmem:[%s66] sm:$0xff]
    %v68 = vld [vmem:[%s66 + $0x8] sm:$0xff]
    %v69 = vand.u32 2147483647, %v67
    %v70 = vand.u32 2147483647, %v68
    %v71 = vadd.f32 %v64, %v69
    %v72 = vadd.f32 %v65, %v70
    %s73 = scalar_lea.vmem [#allocation5], 64
    %v74 = vld [vmem:[%s73] sm:$0xff]
    %v75 = vld [vmem:[%s73 + $0x8] sm:$0xff]
    %v76 = vand.u32 2147483647, %v74
    %v77 = vand.u32 2147483647, %v75
    %v78 = vadd.f32 %v71, %v76
    %v79 = vadd.f32 %v72, %v77
    %s80 = scalar_lea.vmem [#allocation5], 80
    %v81 = vld [vmem:[%s80] sm:$0xff]
    %v82 = vld [vmem:[%s80 + $0x8] sm:$0xff]
    %v83 = vand.u32 2147483647, %v81
    %v84 = vand.u32 2147483647, %v82
    %v85 = vadd.f32 %v78, %v83
    %v86 = vadd.f32 %v79, %v84
    %s87 = scalar_lea.vmem [#allocation5], 96
    %v88 = vld [vmem:[%s87] sm:$0xff]
    %v89 = vld [vmem:[%s87 + $0x8] sm:$0xff]
    %v90 = vand.u32 2147483647, %v88
    %v91 = vand.u32 2147483647, %v89
    %v92 = vadd.f32 %v85, %v90
    %v93 = vadd.f32 %v86, %v91
    %s94 = scalar_lea.vmem [#allocation5], 112
    %v95 = vld [vmem:[%s94] sm:$0xff]
    %v96 = vld [vmem:[%s94 + $0x8] sm:$0xff]
    %v97 = vand.u32 2147483647, %v95
    %v98 = vand.u32 2147483647, %v96
    %v99 = vadd.f32 %v92, %v97
    %v100 = vadd.f32 %v93, %v98
    %v101 = vsub.f32 %v46, %v99
    %v102 = vsub.f32 %v47, %v100
    %v103 = vadd.f32 %v46, %v99
    %v104 = vadd.f32 %v47, %v100
    %vm105 = vcmp.lt.f32.partialorder %v101, 0.0
    %vm106 = vcmp.lt.f32.partialorder %v102, 0.0
    %vm107 = vcmp.gt.f32.partialorder %v103, 0.0
    %vm108 = vcmp.gt.f32.partialorder %v104, 0.0
    %vm109 = vmand %vm105, %vm107
    %vm110 = vmand %vm106, %vm108
    %v111 = vadd.f32 %v99, %v99
    %v112 = vadd.f32 %v100, %v100
    %v113 = vrcp.pop %v111
    %v114 = vrcp.pop %v112
    %v115 = vmul.f32 %v103, %v113
    %v116 = vmul.f32 %v104, %v114
    %v117 = vsel %vm109, %v115, 0.0
    %v118 = vsel %vm110, %v116, 0.0
    %v119 = vsel %vm109, %v115, 1.0
    %v120 = vsel %vm110, %v116, 1.0
    %v121 = vmul.f32 %v101, -0.5
    %v122 = vmul.f32 %v102, -0.5
    %v123 = vmul.f32 %v117, %v121
    %v124 = vmul.f32 %v118, %v122
    %v125 = vmul.f32 %v46, %v119
    %v126 = vmul.f32 %v47, %v120
    %v127 = vadd.f32 %v125, %v123
    %v128 = vadd.f32 %v126, %v124
    %129 = vst [vmem:[#allocation7] sm:$0xff] %v127
    %130 = vst [vmem:[#allocation7 + $0x8] sm:$0xff] %v128
    %v131 = vld [vmem:[#allocation5] sm:$0xff]
    %v132 = vld [vmem:[#allocation5 + $0x8] sm:$0xff]
    %v133 = vmul.f32 %v131, %v119
    %v134 = vmul.f32 %v132, %v120
    %135 = vst [vmem:[#allocation8] sm:$0xff] %v133
    %136 = vst [vmem:[#allocation8 + $0x8] sm:$0xff] %v134
    %v137 = vld [vmem:[%s52] sm:$0xff]
    %v138 = vld [vmem:[%s52 + $0x8] sm:$0xff]
    %v139 = vmul.f32 %v137, %v119
    %v140 = vmul.f32 %v138, %v120
    %s141 = scalar_lea.vmem [#allocation8], 16
    %142 = vst [vmem:[%s141] sm:$0xff] %v139
    %143 = vst [vmem:[%s141 + $0x8] sm:$0xff] %v140
    %v144 = vld [vmem:[%s59] sm:$0xff]
    %v145 = vld [vmem:[%s59 + $0x8] sm:$0xff]
    %v146 = vmul.f32 %v144, %v119
    %v147 = vmul.f32 %v145, %v120
    %s148 = scalar_lea.vmem [#allocation8], 32
    %149 = vst [vmem:[%s148] sm:$0xff] %v146
    %150 = vst [vmem:[%s148 + $0x8] sm:$0xff] %v147
    %v151 = vld [vmem:[%s66] sm:$0xff]
    %v152 = vld [vmem:[%s66 + $0x8] sm:$0xff]
    %v153 = vmul.f32 %v151, %v119
    %v154 = vmul.f32 %v152, %v120
    %s155 = scalar_lea.vmem [#allocation8], 48
    %156 = vst [vmem:[%s155] sm:$0xff] %v153
    %157 = vst [vmem:[%s155 + $0x8] sm:$0xff] %v154
    %v158 = vld [vmem:[%s73] sm:$0xff]
    %v159 = vld [vmem:[%s73 + $0x8] sm:$0xff]
    %v160 = vmul.f32 %v158, %v119
    %v161 = vmul.f32 %v159, %v120
    %s162 = scalar_lea.vmem [#allocation8], 64
    %163 = vst [vmem:[%s162] sm:$0xff] %v160
    %164 = vst [vmem:[%s162 + $0x8] sm:$0xff] %v161
    %v165 = vld [vmem:[%s80] sm:$0xff]
    %v166 = vld [vmem:[%s80 + $0x8] sm:$0xff]
    %v167 = vmul.f32 %v165, %v119
    %v168 = vmul.f32 %v166, %v120
    %s169 = scalar_lea.vmem [#allocation8], 80
    %170 = vst [vmem:[%s169] sm:$0xff] %v167
    %171 = vst [vmem:[%s169 + $0x8] sm:$0xff] %v168
    %v172 = vld [vmem:[%s87] sm:$0xff]
    %v173 = vld [vmem:[%s87 + $0x8] sm:$0xff]
    %v174 = vmul.f32 %v172, %v119
    %v175 = vmul.f32 %v173, %v120
    %s176 = scalar_lea.vmem [#allocation8], 96
    %177 = vst [vmem:[%s176] sm:$0xff] %v174
    %178 = vst [vmem:[%s176 + $0x8] sm:$0xff] %v175
    %v179 = vld [vmem:[%s94] sm:$0xff]
    %v180 = vld [vmem:[%s94 + $0x8] sm:$0xff]
    %v181 = vmul.f32 %v179, %v119
    %v182 = vmul.f32 %v180, %v120
    %s183 = scalar_lea.vmem [#allocation8], 112
    %184 = vst [vmem:[%s183] sm:$0xff] %v181
    %185 = vst [vmem:[%s183 + $0x8] sm:$0xff] %v182
    %s186 = scalar_lea.vmem [#allocation8], 128
    %187 = vst [vmem:[%s186] sm:$0xff] %v123
    %188 = vst [vmem:[%s186 + $0x8] sm:$0xff] %v124
    %vm189 = vcmp.gt.f32.partialorder %v101, 0.0
    %vm190 = vcmp.gt.f32.partialorder %v102, 0.0
    %vm191 = vcmp.lt.f32.partialorder %v103, 0.0
    %vm192 = vcmp.lt.f32.partialorder %v104, 0.0
    %v193 = vsel %vm189, 1.0, 0.0
    %v194 = vsel %vm190, 1.0, 0.0
    %v195 = vmin.f32 %v193, %v194
    %v196 = vrot.slane %v195, 4
    %v197 = vmin.f32 %v195, %v196
    %v198 = vrot.slane %v197, 2
    %v199 = vmin.f32 %v197, %v198
    %v200 = vrot.slane %v199, 1
    %v201 = vmin.f32 %v199, %v200
    %vm202 = vcmp.gt.f32.partialorder %v201, 0.0
    %v203 = vsel %vm202, 1, 0
    %204 = vst [vmem:[#allocation10] sm:$0x1] %v203
    %v205 = vsel %vm191, 1.0, 0.0
    %v206 = vsel %vm192, 1.0, 0.0
    %v207 = vmin.f32 %v205, %v206
    %v208 = vrot.slane %v207, 4
    %v209 = vmin.f32 %v207, %v208
    %v210 = vrot.slane %v209, 2
    %v211 = vmin.f32 %v209, %v210
    %v212 = vrot.slane %v211, 1
    %v213 = vmin.f32 %v211, %v212
    %vm214 = vcmp.gt.f32.partialorder %v213, 0.0
    %v215 = vsel %vm214, 1, 0
    %216 = vst [vmem:[#allocation11] sm:$0x1] %v215
    // Predicated region
    $region18: #{tpu_custom_call.1} parent=1 // pred_check
      _
    $region19: #{tpu_custom_call.1} parent=1 // pred_check_branch
      %218 = sbr.rel (0) target = $region21
    $region20: #{tpu_custom_call.1} parent=1 // pred_region
      %s220 = ssub.s32 256, 256
      %221 = vsyncadd [#allocation4], %s220
      %s222 = sshll.u32 [#allocation7], 4
      %s223 = int_to_ptr.vmem [resolvable:$true] %s222
      %228 = dma.vmem_to_hbm [thread:$0]  %s223, 256, %s2, [#allocation4], 128, 128, 8
    $region21: #{tpu_custom_call.1} parent=1 // pred_fallthru
      _
    // Predicated region
    $region22: #{tpu_custom_call.1} parent=1 // pred_check
      _
    $region23: #{tpu_custom_call.1} parent=1 // pred_check_branch
      %230 = sbr.rel (0) target = $region25
    $region24: #{tpu_custom_call.1} parent=1 // pred_region
      %s232 = ssub.s32 2304, 2304
      %233 = vsyncadd [#allocation9], %s232
      %s234 = sshll.u32 [#allocation8], 4
      %s235 = int_to_ptr.vmem [resolvable:$true] %s234
      %240 = dma.vmem_to_hbm [thread:$0]  %s235, 2304, %s3, [#allocation9], 128, 128, 8
    $region25: #{tpu_custom_call.1} parent=1 // pred_fallthru
      _
    // Predicated region
    $region26: #{tpu_custom_call.1} parent=1 // pred_check
      _
    $region27: #{tpu_custom_call.1} parent=1 // pred_check_branch
      %242 = sbr.rel (0) target = $region29
    $region28: #{tpu_custom_call.1} parent=1 // pred_region
      %s244 = ssub.s32 16, 16
      %245 = vsyncadd [#allocation9], %s244
      %s247 = sshll.u32 [#allocation10], 4
      %s248 = int_to_ptr.vmem [resolvable:$true] %s247
      %250 = dma.vmem_to_hbm [thread:$0]  %s248, 16, %s4, [#allocation9]
    $region29: #{tpu_custom_call.1} parent=1 // pred_fallthru
      _
    // Predicated region
    $region30: #{tpu_custom_call.1} parent=1 // pred_check
      _
    $region31: #{tpu_custom_call.1} parent=1 // pred_check_branch
      %252 = sbr.rel (0) target = $region33
    $region32: #{tpu_custom_call.1} parent=1 // pred_region
      %s254 = ssub.s32 16, 16
      %255 = vsyncadd [#allocation12], %s254
      %s257 = sshll.u32 [#allocation11], 4
      %s258 = int_to_ptr.vmem [resolvable:$true] %s257
      %260 = dma.vmem_to_hbm [thread:$0]  %s258, 16, %s5, [#allocation12]
    $region33: #{tpu_custom_call.1} parent=1 // pred_fallthru
      _
    // Predicated region
    $region34: #{tpu_custom_call.1} parent=1 // pred_check
      _
    $region35: #{tpu_custom_call.1} parent=1 // pred_check_branch
      %262 = sbr.rel (0) target = $region37
    $region36: #{tpu_custom_call.1} parent=1 // pred_region
      %263 = dma.done [#allocation4], 256
    $region37: #{tpu_custom_call.1} parent=1 // pred_fallthru
      _
    // Predicated region
    $region38: #{tpu_custom_call.1} parent=1 // pred_check
      _
    $region39: #{tpu_custom_call.1} parent=1 // pred_check_branch
      %265 = sbr.rel (0) target = $region41
    $region40: #{tpu_custom_call.1} parent=1 // pred_region
      %266 = dma.done [#allocation9], 2304
    $region41: #{tpu_custom_call.1} parent=1 // pred_fallthru
      _
    // Predicated region
    $region42: #{tpu_custom_call.1} parent=1 // pred_check
      _
    $region43: #{tpu_custom_call.1} parent=1 // pred_check_branch
      %268 = sbr.rel (0) target = $region45
    $region44: #{tpu_custom_call.1} parent=1 // pred_region
      %269 = dma.done [#allocation9], 16
    $region45: #{tpu_custom_call.1} parent=1 // pred_fallthru
      _
    // Predicated region
    $region46: #{tpu_custom_call.1} parent=1 // pred_check
      _
    $region47: #{tpu_custom_call.1} parent=1 // pred_check_branch
      %271 = sbr.rel (0) target = $region49
    $region48: #{tpu_custom_call.1} parent=1 // pred_region
      %272 = dma.done [#allocation12], 16
    $region49: #{tpu_custom_call.1} parent=1 // pred_fallthru
      _
    %273 = vsyncpa [#allocation3], 1
    %274 = vsyncpa [#allocation6], 1
    %275 = vsyncpa [#allocation4], 1
    %276 = vsyncpa [#allocation9], 1
    %277 = vsyncpa [#allocation12], 1

</llo_original>
